<compile_context>
chip_gen: v7x
topology: tpu7x:2x2x1
jax: 0.10.0
libtpu: 0.0.40
codegen_flags: <defaults>
</compile_context>

<pallas_src>
import functools

import jax
import jax.numpy as jnp
from jax.experimental import pallas as pl
from jax.experimental.pallas import tpu as pltpu


def _round_up(x: int, m: int) -> int:
    return ((x + m - 1) // m) * m


def _cdiv(a: int, b: int) -> int:
    return (a + b - 1) // b


def _conv1x1_kernel(x_ref, xh_ref, w_ref, b_ref, o_ref, *, padding, L, TL, HALO):
    # x_ref : (C_in, TL)   input columns [j*TL, j*TL+TL)   (clamped / partially valid)
    # xh_ref: (C_in, HALO) input columns ending at j*TL     (left halo, clamped)
    # w_ref : (C_out, C_in)   resident weights
    # b_ref : (C_out, 1)      resident bias
    # o_ref : (C_out, TL)   output columns [j*TL, j*TL+TL) of the length-(L+2p) output
    j = pl.program_id(1)

    x = x_ref[...]
    if padding > 0:
        # Shift right by `padding` lanes: column t now holds input column j*TL+t-padding.
        x = pltpu.roll(x, shift=padding, axis=1)
        col_in = jax.lax.broadcasted_iota(jnp.int32, x.shape, 1)
        # First `padding` columns: previous tile's last columns (halo), or the conv's
        # left zero padding when this is the first length tile.
        for p in range(padding):
            halo_col = xh_ref[:, HALO - padding + p : HALO - padding + p + 1]  # (C_in, 1)
            left = jnp.where(j > 0, halo_col, 0.0)
            x = jnp.where(col_in == p, left, x)

    y = jnp.dot(w_ref[...], x, preferred_element_type=jnp.float32) + b_ref[...]

    # Columns at/after L+padding are the conv's right zero padding -> bias only.
    # This also masks any garbage from the partially-valid / clamped input block;
    # columns beyond L_out are dropped by Pallas' partial store.
    col_out = jax.lax.broadcasted_iota(jnp.int32, o_ref.shape, 1)
    g = j * TL + col_out
    o_ref[...] = jnp.where(g >= L + padding, b_ref[...], y)


@functools.partial(jax.jit, static_argnames=("padding", "tl_max"))
def my_conv1d_forward(x, weight, bias, *, padding=1, tl_max=65536):
    """Forward of My_Conv1d (kernel_size=1, stride=1, dilation=1, groups=1).

    x      : (N, C_in, L)
    weight : (C_out, C_in, 1)   (PyTorch Conv1d weight layout)
    bias   : (C_out,)
    returns: (N, C_out, L + 2*padding) float32
    """
    N, C_in, L = x.shape
    C_out = weight.shape[0]
    L_out = L + 2 * padding  # kernel_size=1, stride=1, dilation=1

    # Length tile: multiple of 128, as large as VMEM comfortably allows.
    tl_max = max(128, (min(int(tl_max), 131072) // 128) * 128)
    TL = min(_round_up(L_out, 128), tl_max)
    if N < 2 and L >= 128:
        # v7x has 2 TensorCores: when the batch axis can't split, make sure the
        # length axis provides at least 2 grid steps.
        TL = min(TL, max(128, _round_up(_cdiv(L_out, 2), 128)))
    if L < 128:
        TL = _round_up(L_out, 128)  # single tile; halo is never used
    num_l = _cdiv(L_out, TL)
    num_in_blocks = _cdiv(L, TL)
    HALO = 128 if L >= 128 else L
    num_halo_blocks = _cdiv(L, HALO)

    x = x.astype(jnp.float32)
    w2d = weight[:, :, 0].astype(jnp.float32)           # (C_out, C_in)
    b2d = bias.astype(jnp.float32).reshape(C_out, 1)    # (C_out, 1)

    kernel = functools.partial(
        _conv1x1_kernel, padding=padding, L=L, TL=TL, HALO=HALO)

    def x_map(n, j):
        # Clamp: the last output tile may lie entirely past the input; its values are
        # masked (bias / halo) in the kernel.
        return (n, 0, jnp.minimum(j, num_in_blocks - 1))

    def halo_map(n, j):
        h = j * (TL // 128) - 1 if HALO == 128 else j - 1
        return (n, 0, jnp.maximum(jnp.minimum(h, num_halo_blocks - 1), 0))

    # Double-buffered x + out tiles (C_in padded to 8 sublanes) ~= 128*TL bytes.
    vmem_need = 128 * TL + (1 << 20)
    vmem_limit = None if vmem_need <= (16 << 20) else int(min(vmem_need, 32 << 20))

    out = pl.pallas_call(
        kernel,
        out_shape=jax.ShapeDtypeStruct((N, C_out, L_out), jnp.float32),
        grid=(N, num_l),
        in_specs=[
            pl.BlockSpec((None, C_in, TL), x_map),        # main input tile
            pl.BlockSpec((None, C_in, HALO), halo_map),   # left halo (tiny)
            pl.BlockSpec((C_out, C_in), lambda n, j: (0, 0)),  # weights: resident
            pl.BlockSpec((C_out, 1), lambda n, j: (0, 0)),     # bias: resident
        ],
        out_specs=pl.BlockSpec((None, C_out, TL), lambda n, j: (n, 0, j)),
        compiler_params=pltpu.CompilerParams(
            dimension_semantics=("parallel", "parallel"),
            vmem_limit_bytes=vmem_limit,
        ),
    )(x, x, w2d, b2d)
    return out


def _ref_conv1d(x, weight, bias, padding):
    xp = jnp.pad(x.astype(jnp.float32), ((0, 0), (0, 0), (padding, padding)))
    return (
        jnp.einsum("oc,ncl->nol", weight[:, :, 0].astype(jnp.float32), xp,
                   precision=jax.lax.Precision.HIGHEST)
        + bias.astype(jnp.float32)[None, :, None]
    )


if __name__ == "__main__":
    key = jax.random.PRNGKey(0)
    k_x, k_w, k_b, k_x2, k_x3 = jax.random.split(key, 5)

    C_in, C_out = 4, 8
    # PyTorch-style uniform init bound 1/sqrt(fan_in * kernel_size)
    bound = 1.0 / jnp.sqrt(jnp.float32(C_in * 1))
    weight = jax.random.uniform(k_w, (C_out, C_in, 1), jnp.float32, -bound, bound)
    bias = jax.random.uniform(k_b, (C_out,), jnp.float32, -bound, bound)

    # 1) module-sized example: batch=2, channels 4->8, length 16, padding=1
    x1 = jax.random.normal(k_x, (2, C_in, 16), dtype=jnp.float32)
    out1 = jax.block_until_ready(my_conv1d_forward(x1, weight, bias, padding=1))
    assert out1.shape == (2, C_out, 18)
    assert jnp.allclose(out1, _ref_conv1d(x1, weight, bias, 1), atol=1e-5), "case1 mismatch"

    # 2) multi-tile path (cross-tile left halo) at a small, fast size
    x2 = jax.random.normal(k_x2, (2, C_in, 300), dtype=jnp.float32)
    out2 = jax.block_until_ready(
        my_conv1d_forward(x2, weight, bias, padding=1, tl_max=128))
    assert jnp.allclose(out2, _ref_conv1d(x2, weight, bias, 1), atol=1e-5), "case2 mismatch"

    # 3) batch=1 (occupancy split) + final output tile past the last input tile
    x3 = jax.random.normal(k_x3, (1, C_in, 256), dtype=jnp.float32)
    out3 = jax.block_until_ready(
        my_conv1d_forward(x3, weight, bias, padding=1, tl_max=128))
    assert jnp.allclose(out3, _ref_conv1d(x3, weight, bias, 1), atol=1e-5), "case3 mismatch"

    print("KERNEL_OK")
</pallas_src>

<mosaic_0001>
module attributes {stable_mosaic.version = 11 : i64} {
  func.func @_conv1x1_kernel(%arg0: i32, %arg1: i32, %arg2: memref<1x4x128xf32, #tpu.memory_space<vmem>>, %arg3: memref<1x4x16xf32, #tpu.memory_space<vmem>>, %arg4: memref<8x4xf32, #tpu.memory_space<vmem>>, %arg5: memref<8x1xf32, #tpu.memory_space<vmem>>, %arg6: memref<1x8x128xf32, #tpu.memory_space<vmem>>) attributes {dimension_semantics = [#tpu.dimension_semantics<parallel>, #tpu.dimension_semantics<parallel>], iteration_bounds = array<i64: 2, 1>, scalar_prefetch = 0 : i64, scratch_operands = 0 : i64, tpu.core_type = #tpu.core_type<tc>, window_params = [{transform_indices = @transform_0, window_bounds = array<i64: 1, 4, 128>}, {transform_indices = @transform_1, window_bounds = array<i64: 1, 4, 16>}, {pipeline_mode = #tpu.pipeline_mode<synchronous>, transform_indices = @transform_2, window_bounds = array<i64: 8, 4>}, {pipeline_mode = #tpu.pipeline_mode<synchronous>, transform_indices = @transform_3, window_bounds = array<i64: 8, 1>}, {transform_indices = @transform_4, window_bounds = array<i64: 1, 8, 128>}]} {
    %c0 = arith.constant 0 : index
    %c0_0 = arith.constant 0 : index
    %c0_1 = arith.constant 0 : index
    %0 = vector.load %arg2[%c0, %c0_0, %c0_1] : memref<1x4x128xf32, #tpu.memory_space<vmem>>, vector<1x4x128xf32>
    %1 = vector.shape_cast %0 : vector<1x4x128xf32> to vector<4x128xf32>
    %c1_i32 = arith.constant 1 : i32
    %2 = tpu.dynamic_rotate %1 by %c1_i32 dim 1 : vector<4x128xf32>, i32 -> vector<4x128xf32>
    %3 = tpu.iota {dimensions = array<i32: 1>} : vector<4x128xi32>
    %c0_2 = arith.constant 0 : index
    %c0_3 = arith.constant 0 : index
    %c15 = arith.constant 15 : index
    %4 = vector.load %arg3[%c0_2, %c0_3, %c15] : memref<1x4x16xf32, #tpu.memory_space<vmem>>, vector<1x4x1xf32>
    %5 = vector.shape_cast %4 : vector<1x4x1xf32> to vector<4x1xf32>
    %c0_i32 = arith.constant 0 : i32
    %6 = arith.cmpi sgt, %arg1, %c0_i32 : i32
    %cst = arith.constant 0.000000e+00 : f32
    %7 = vector.broadcast %cst : f32 to vector<4x1xf32>
    %8 = arith.select %6, %5, %7 : vector<4x1xf32>
    %c0_i32_4 = arith.constant 0 : i32
    %9 = vector.broadcast %c0_i32_4 : i32 to vector<4x128xi32>
    %10 = arith.cmpi eq, %3, %9 : vector<4x128xi32>
    %11 = vector.shape_cast %8 : vector<4x1xf32> to vector<4x1xf32>
    %12 = vector.broadcast %11 : vector<4x1xf32> to vector<4x128xf32>
    %13 = arith.select %10, %12, %2 : vector<4x128xi1>, vector<4x128xf32>
    %c0_5 = arith.constant 0 : index
    %c0_6 = arith.constant 0 : index
    %14 = vector.load %arg4[%c0_5, %c0_6] : memref<8x4xf32, #tpu.memory_space<vmem>>, vector<8x4xf32>
    %cst_7 = arith.constant dense<0.000000e+00> : vector<8x128xf32>
    %15 = tpu.matmul %14, %13, %cst_7 {dimension_numbers = #tpu.dot_dimension_numbers<[1], [0], [0], [1], [0, 0, 1, 1], [], []>} : vector<8x4xf32>, vector<4x128xf32>, vector<8x128xf32> -> vector<8x128xf32>
    %c0_8 = arith.constant 0 : index
    %c0_9 = arith.constant 0 : index
    %16 = vector.load %arg5[%c0_8, %c0_9] : memref<8x1xf32, #tpu.memory_space<vmem>>, vector<8x1xf32>
    %17 = vector.broadcast %16 : vector<8x1xf32> to vector<8x128xf32>
    %18 = arith.addf %15, %17 : vector<8x128xf32>
    %19 = tpu.iota {dimensions = array<i32: 1>} : vector<8x128xi32>
    %c128_i32 = arith.constant 128 : i32
    %20 = arith.muli %arg1, %c128_i32 : i32
    %21 = vector.broadcast %20 : i32 to vector<8x128xi32>
    %22 = arith.addi %21, %19 : vector<8x128xi32>
    %c17_i32 = arith.constant 17 : i32
    %23 = vector.broadcast %c17_i32 : i32 to vector<8x128xi32>
    %24 = arith.cmpi sge, %22, %23 : vector<8x128xi32>
    %c0_10 = arith.constant 0 : index
    %c0_11 = arith.constant 0 : index
    %25 = vector.load %arg5[%c0_10, %c0_11] : memref<8x1xf32, #tpu.memory_space<vmem>>, vector<8x1xf32>
    %26 = vector.shape_cast %25 : vector<8x1xf32> to vector<8x1xf32>
    %27 = vector.broadcast %26 : vector<8x1xf32> to vector<8x128xf32>
    %28 = arith.select %24, %27, %18 : vector<8x128xi1>, vector<8x128xf32>
    %c0_12 = arith.constant 0 : index
    %c0_13 = arith.constant 0 : index
    %c0_14 = arith.constant 0 : index
    %29 = vector.load %arg6[%c0_12, %c0_13, %c0_14] : memref<1x8x128xf32, #tpu.memory_space<vmem>>, vector<1x8x128xf32>
    %30 = vector.shape_cast %29 : vector<1x8x128xf32> to vector<8x128xf32>
    %31 = vector.shape_cast %28 : vector<8x128xf32> to vector<1x8x128xf32>
    tpu.vector_store %arg6[%c0_12, %c0_13, %c0_14], %31 {strides = array<i32>} : memref<1x8x128xf32, #tpu.memory_space<vmem>>, vector<1x8x128xf32>,
    return
  }
  func.func @transform_0(%arg0: i32, %arg1: i32) -> (i32, i32, i32) {
    %c0_i32 = arith.constant 0 : i32
    %0 = arith.minsi %arg1, %c0_i32 : i32
    %c0_i32_0 = arith.constant 0 : i32
    %c0_i32_1 = arith.constant 0 : i32
    return %arg0, %c0_i32_0, %0 : i32, i32, i32
  }
  func.func @transform_1(%arg0: i32, %arg1: i32) -> (i32, i32, i32) {
    %c1_i32 = arith.constant 1 : i32
    %0 = arith.subi %arg1, %c1_i32 : i32
    %c0_i32 = arith.constant 0 : i32
    %1 = arith.minsi %0, %c0_i32 : i32
    %c0_i32_0 = arith.constant 0 : i32
    %2 = arith.maxsi %1, %c0_i32_0 : i32
    %c0_i32_1 = arith.constant 0 : i32
    %c0_i32_2 = arith.constant 0 : i32
    return %arg0, %c0_i32_1, %2 : i32, i32, i32
  }
  func.func @transform_2(%arg0: i32, %arg1: i32) -> (i32, i32) {
    %c0_i32 = arith.constant 0 : i32
    %c0_i32_0 = arith.constant 0 : i32
    %c0_i32_1 = arith.constant 0 : i32
    return %c0_i32, %c0_i32_0 : i32, i32
  }
  func.func @transform_3(%arg0: i32, %arg1: i32) -> (i32, i32) {
    %c0_i32 = arith.constant 0 : i32
    %c0_i32_0 = arith.constant 0 : i32
    %c0_i32_1 = arith.constant 0 : i32
    return %c0_i32, %c0_i32_0 : i32, i32
  }
  func.func @transform_4(%arg0: i32, %arg1: i32) -> (i32, i32, i32) {
    %c0_i32 = arith.constant 0 : i32
    %c0_i32_0 = arith.constant 0 : i32
    return %arg0, %c0_i32, %arg1 : i32, i32, i32
  }
}

</mosaic_0001>

<llo_original>
// kernel: my_conv1d_forward.1
$region0: #{my_conv1d_forward.1}
  #allocation0 [shape = 'u32[]', space=smem, size = 0x4, offset = 0x4, fixed_abs, tag = 'smem constant byte address 0x4 - core index']
  #allocation1 [shape = 'u32[144,128]{1,0:T(1,128)}', space=vmem, size = 0x12000, scoped, tag = 'internal scratch']
  %s0 = inlined_call_operand.vmem [shape: f32[2,4,16], index: 0, kind: input, shape index: {}, may-alias: {0,1}]
  %s1 = inlined_call_operand.vmem [shape: f32[2,4,16], index: 1, kind: input, shape index: {}, may-alias: {0,1}]
  %s2 = inlined_call_operand.vmem [shape: f32[8,4], index: 2, kind: input, shape index: {}]
  %s3 = inlined_call_operand.vmem [shape: f32[8,1], index: 3, kind: input, shape index: {}]
  %s4 = inlined_call_operand.hbm [shape: f32[2,8,18], index: 4, kind: output, shape index: {}]
  %s5 = sld [smem:[#allocation0]]
  $region49: #{my_conv1d_forward.1} parent=0
    _
  %s7 = ssub.s32 1, %s5
  %s8 = scalar_select 0, %s7, %s5
  $region1: #{my_conv1d_forward.1} parent=0
    #allocation2 [shape = 'u8[8192]{0}', space=vmem, size = 0x2000, scoped, tag = 'output window, operand 0']
    #allocation3 [shape = 's32[2]{0}', space=sflag, size = 0x8, scoped, tag = 'scoped memory for my_conv1d_forward.1']
    %9 = vsyncpa [#allocation3], 0
    %s10 = scalar_lea.sflag [#allocation3], 1
    %11 = vsyncpa %s10, 0
    loop: start=0, step=1, limit=4
    $region2: #{my_conv1d_forward.1} parent=1 // loop_pre_header
      _
    $region3: #{my_conv1d_forward.1} parent=1 // loop_header
      %s13 = sphi 0, %s17
      %p14 = scmp.ge.s32.totalorder %s13, 4
      %s20 = sphi 0, %s32
      %s21 = sphi 0, %s28
      %s22 = sphi 0, %s20
      %s23 = sphi 0, %s21
      %s24 = sphi 0, %s22
      %s25 = sphi 0, %s23
      %s41 = sphi 0, %s43
      %s44 = sphi 0, %s41
      %s45 = sphi 0, %s44
      %s61 = sphi 0, %s45
      %s79 = sphi 0, %s81
      %s82 = sphi 0, %s79
      %s83 = sphi 0, %s82
      %s99 = sphi 0, %s83
      %s103 = sphi 0, %s103
      %s105 = sphi 0, %s103
      %s106 = sphi 0, %s105
      %s120 = sphi 0, %s106
      %s124 = sphi 0, %s124
      %s126 = sphi 0, %s124
      %s127 = sphi 0, %s126
      %s141 = sphi 0, %s127
      %s149 = sphi 0, %s151
      %s152 = sphi 0, %s149
      %s153 = sphi 0, %s152
      %s169 = sphi 0, %s153
    $region4: #{my_conv1d_forward.1} parent=1 // loop_header_branch
      %16 = sbr.rel (%p14) target = $region8
    $region5: #{my_conv1d_forward.1} parent=1 // loop_body
      %s18 = ssub.s32 %s13, 1
      %s19 = ssub.s32 %s13, 2
      %s26 = sadd.s32 1, %s21
      %p27 = scmp.ge.s32.totalorder %s26, 1
      %s28 = scalar_select %p27, 0, %s26
      %s29 = sadd.s32 1, %s20
      %s30 = scalar_select %p27, %s29, %s20
      %p31 = scmp.ge.s32.totalorder %s30, 2
      %s32 = scalar_select %p31, 0, %s30
      %p33 = scmp.lt.s32.totalorder %s21, 0
      %s34 = scalar_select %p33, %s21, 0
      %p35 = scmp.lt.s32.totalorder %s28, 0
      %s36 = scalar_select %p35, %s28, 0
      %s37 = ssub.s32 %s20, %s32
      %s38 = ssub.s32 %s34, %s36
      %s39 = sor.u32 %s37, %s38
      %p40 = scmp.eq.s32.totalorder %s39, 0
      %s42 = sadd.s32 %s41, 1
      %s43 = scalar_select %p40, %s41, %s42
      %p46 = pneg %p40
      %p47 = scmp.eq.s32.totalorder %s13, 1
      %p48 = por %p46, %p47
      %p49 = scmp.ne.s32.totalorder %s41, %s44
      %p50 = scmp.eq.s32.totalorder %s13, 0
      %p51 = por %p49, %p50
      %p52 = scmp.ne.s32.totalorder %s41, %s44
      %p53 = scmp.eq.s32.totalorder %s18, 1
      %p54 = por %p52, %p53
      %p55 = scmp.ne.s32.totalorder %s44, %s45
      %p56 = scmp.eq.s32.totalorder %s18, 0
      %p57 = por %p55, %p56
      %p58 = scmp.ne.s32.totalorder %s44, %s45
      %p59 = scmp.eq.s32.totalorder %s19, 1
      %p60 = por %p58, %p59
      %p62 = scmp.ne.s32.totalorder %s45, %s61
      %p63 = scmp.eq.s32.totalorder %s19, 0
      %p64 = por %p62, %p63
      %s65 = ssub.s32 %s21, 1
      %p66 = scmp.lt.s32.totalorder %s65, 0
      %s67 = scalar_select %p66, %s65, 0
      %p68 = scmp.gt.s32.totalorder %s67, 0
      %s69 = scalar_select %p68, %s67, 0
      %s70 = ssub.s32 %s28, 1
      %p71 = scmp.lt.s32.totalorder %s70, 0
      %s72 = scalar_select %p71, %s70, 0
      %p73 = scmp.gt.s32.totalorder %s72, 0
      %s74 = scalar_select %p73, %s72, 0
      %s75 = ssub.s32 %s20, %s32
      %s76 = ssub.s32 %s69, %s74
      %s77 = sor.u32 %s75, %s76
      %p78 = scmp.eq.s32.totalorder %s77, 0
      %s80 = sadd.s32 %s79, 1
      %s81 = scalar_select %p78, %s79, %s80
      %p84 = pneg %p78
      %p85 = scmp.eq.s32.totalorder %s13, 1
      %p86 = por %p84, %p85
      %p87 = scmp.ne.s32.totalorder %s79, %s82
      %p88 = scmp.eq.s32.totalorder %s13, 0
      %p89 = por %p87, %p88
      %p90 = scmp.ne.s32.totalorder %s79, %s82
      %p91 = scmp.eq.s32.totalorder %s18, 1
      %p92 = por %p90, %p91
      %p93 = scmp.ne.s32.totalorder %s82, %s83
      %p94 = scmp.eq.s32.totalorder %s18, 0
      %p95 = por %p93, %p94
      %p96 = scmp.ne.s32.totalorder %s82, %s83
      %p97 = scmp.eq.s32.totalorder %s19, 1
      %p98 = por %p96, %p97
      %p100 = scmp.ne.s32.totalorder %s83, %s99
      %p101 = scmp.eq.s32.totalorder %s19, 0
      %p102 = por %p100, %p101
      %s104 = sadd.s32 %s103, 1
      %p107 = scmp.eq.s32.totalorder %s13, 1
      %p108 = scmp.ne.s32.totalorder %s103, %s105
      %p109 = scmp.eq.s32.totalorder %s13, 0
      %p110 = por %p108, %p109
      %p111 = scmp.ne.s32.totalorder %s103, %s105
      %p112 = scmp.eq.s32.totalorder %s18, 1
      %p113 = por %p111, %p112
      %p114 = scmp.ne.s32.totalorder %s105, %s106
      %p115 = scmp.eq.s32.totalorder %s18, 0
      %p116 = por %p114, %p115
      %p117 = scmp.ne.s32.totalorder %s105, %s106
      %p118 = scmp.eq.s32.totalorder %s19, 1
      %p119 = por %p117, %p118
      %p121 = scmp.ne.s32.totalorder %s106, %s120
      %p122 = scmp.eq.s32.totalorder %s19, 0
      %p123 = por %p121, %p122
      %s125 = sadd.s32 %s124, 1
      %p128 = scmp.eq.s32.totalorder %s13, 1
      %p129 = scmp.ne.s32.totalorder %s124, %s126
      %p130 = scmp.eq.s32.totalorder %s13, 0
      %p131 = por %p129, %p130
      %p132 = scmp.ne.s32.totalorder %s124, %s126
      %p133 = scmp.eq.s32.totalorder %s18, 1
      %p134 = por %p132, %p133
      %p135 = scmp.ne.s32.totalorder %s126, %s127
      %p136 = scmp.eq.s32.totalorder %s18, 0
      %p137 = por %p135, %p136
      %p138 = scmp.ne.s32.totalorder %s126, %s127
      %p139 = scmp.eq.s32.totalorder %s19, 1
      %p140 = por %p138, %p139
      %p142 = scmp.ne.s32.totalorder %s127, %s141
      %p143 = scmp.eq.s32.totalorder %s19, 0
      %p144 = por %p142, %p143
      %s145 = ssub.s32 %s20, %s32
      %s146 = ssub.s32 %s21, %s28
      %s147 = sor.u32 %s145, %s146
      %p148 = scmp.eq.s32.totalorder %s147, 0
      %s150 = sadd.s32 %s149, 1
      %s151 = scalar_select %p148, %s149, %s150
      %p154 = pneg %p148
      %p155 = scmp.eq.s32.totalorder %s13, 1
      %p156 = por %p154, %p155
      %p157 = scmp.ne.s32.totalorder %s149, %s152
      %p158 = scmp.eq.s32.totalorder %s13, 0
      %p159 = por %p157, %p158
      %p160 = scmp.ne.s32.totalorder %s149, %s152
      %p161 = scmp.eq.s32.totalorder %s18, 1
      %p162 = por %p160, %p161
      %p163 = scmp.ne.s32.totalorder %s152, %s153
      %p164 = scmp.eq.s32.totalorder %s18, 0
      %p165 = por %p163, %p164
      %p166 = scmp.ne.s32.totalorder %s152, %s153
      %p167 = scmp.eq.s32.totalorder %s19, 1
      %p168 = por %p166, %p167
      %p170 = scmp.ne.s32.totalorder %s153, %s169
      %p171 = scmp.eq.s32.totalorder %s19, 0
      %p172 = por %p170, %p171
      %p173 = scmp.le.s32.totalorder 1, %s13
      %p174 = scmp.lt.s32.totalorder %s13, 3
      %p175 = pnand %p173, %p174
      %p176 = pneg %p175
      // Predicated region
      $region9: #{my_conv1d_forward.1} parent=5 // pred_check
        _
      $region10: #{my_conv1d_forward.1} parent=5 // pred_check_branch
        %178 = sbr.rel (%p175) target = $region12
      $region11: #{my_conv1d_forward.1} parent=5 // pred_region
        %s179 = ssub.s32 %s13, 1
        // Predicated region
        $region13: #{my_conv1d_forward.1} parent=11 // pred_check
          %p180 = pneg %p116
        $region14: #{my_conv1d_forward.1} parent=11 // pred_check_branch
          %182 = sbr.rel (%p180) target = $region16
        $region15: #{my_conv1d_forward.1} parent=11 // pred_region
          _
        $region16: #{my_conv1d_forward.1} parent=11 // pred_fallthru
          _
        // Predicated region
        $region17: #{my_conv1d_forward.1} parent=11 // pred_check
          %p183 = pneg %p137
        $region18: #{my_conv1d_forward.1} parent=11 // pred_check_branch
          %185 = sbr.rel (%p183) target = $region20
        $region19: #{my_conv1d_forward.1} parent=11 // pred_region
          _
        $region20: #{my_conv1d_forward.1} parent=11 // pred_fallthru
          _
      $region12: #{my_conv1d_forward.1} parent=5 // pred_fallthru
        _
      %p186 = scmp.lt.s32.totalorder %s13, 2
      // Predicated region
      $region21: #{my_conv1d_forward.1} parent=5 // pred_check
        %p187 = pneg %p186
      $region22: #{my_conv1d_forward.1} parent=5 // pred_check_branch
        %189 = sbr.rel (%p187) target = $region24
      $region23: #{my_conv1d_forward.1} parent=5 // pred_region
        // Predicated region
        $region25: #{my_conv1d_forward.1} parent=23 // pred_check
          %p190 = pneg %p51
        $region26: #{my_conv1d_forward.1} parent=23 // pred_check_branch
          %192 = sbr.rel (%p190) target = $region28
        $region27: #{my_conv1d_forward.1} parent=23 // pred_region
          %p193 = scmp.lt.s32.totalorder %s21, 0
          %s194 = scalar_select %p193, %s21, 0
          %p195 = scmp.lt.s32.totalorder %s20, 1
          %s196 = scalar_select %p195, %s20, 1
          %p197 = scmp.lt.s32.totalorder %s194, 0
          %s198 = scalar_select %p197, %s194, 0
          %s199 = sadd.s32 %s198, %s196
          %s200 = smul.addr %s199, 4
          %s201 = scalar_lea.vmem %s0, %s200
          %p202 = scmp.lt.s32.totalorder %s21, 0
          %s203 = scalar_select %p202, %s21, 0
        $region28: #{my_conv1d_forward.1} parent=23 // pred_fallthru
          _
        // Predicated region
        $region29: #{my_conv1d_forward.1} parent=23 // pred_check
          %p204 = pneg %p89
        $region30: #{my_conv1d_forward.1} parent=23 // pred_check_branch
          %206 = sbr.rel (%p204) target = $region32
        $region31: #{my_conv1d_forward.1} parent=23 // pred_region
          %s207 = ssub.s32 %s21, 1
          %p208 = scmp.lt.s32.totalorder %s207, 0
          %s209 = scalar_select %p208, %s207, 0
          %p210 = scmp.gt.s32.totalorder %s209, 0
          %s211 = scalar_select %p210, %s209, 0
          %p212 = scmp.lt.s32.totalorder %s20, 1
          %s213 = scalar_select %p212, %s20, 1
          %p214 = scmp.lt.s32.totalorder %s211, 0
          %s215 = scalar_select %p214, %s211, 0
          %s216 = sadd.s32 %s215, %s213
          %s217 = smul.addr %s216, 4
          %s218 = scalar_lea.vmem %s1, %s217
          %s219 = ssub.s32 %s21, 1
          %p220 = scmp.lt.s32.totalorder %s219, 0
          %s221 = scalar_select %p220, %s219, 0
          %p222 = scmp.gt.s32.totalorder %s221, 0
          %s223 = scalar_select %p222, %s221, 0
        $region32: #{my_conv1d_forward.1} parent=23 // pred_fallthru
          _
      $region24: #{my_conv1d_forward.1} parent=5 // pred_fallthru
        _
      %p224 = scmp.le.s32.totalorder 1, %s13
      %p225 = scmp.lt.s32.totalorder %s13, 3
      %p226 = pnand %p224, %p225
      %p227 = pneg %p226
      // Predicated region
      $region33: #{my_conv1d_forward.1} parent=5 // pred_check
        _
      $region34: #{my_conv1d_forward.1} parent=5 // pred_check_branch
        %229 = sbr.rel (%p226) target = $region36
      $region35: #{my_conv1d_forward.1} parent=5 // pred_region
        %s230 = ssub.s32 %s13, 1
        %p231 = scmp.lt.s32.totalorder %s23, 0
        %s232 = scalar_select %p231, %s23, 0
        %p233 = scmp.lt.s32.totalorder %s22, 1
        %s234 = scalar_select %p233, %s22, 1
        %p235 = scmp.lt.s32.totalorder %s232, 0
        %s236 = scalar_select %p235, %s232, 0
        %s237 = sadd.s32 %s236, %s234
        %s238 = smul.addr %s237, 4
        %s239 = scalar_lea.vmem %s0, %s238
        %p240 = pneg %p57
        %p241 = pneg %p54
        %s242 = ssub.s32 %s23, 1
        %p243 = scmp.lt.s32.totalorder %s242, 0
        %s244 = scalar_select %p243, %s242, 0
        %p245 = scmp.gt.s32.totalorder %s244, 0
        %s246 = scalar_select %p245, %s244, 0
        %p247 = scmp.lt.s32.totalorder %s22, 1
        %s248 = scalar_select %p247, %s22, 1
        %p249 = scmp.lt.s32.totalorder %s246, 0
        %s250 = scalar_select %p249, %s246, 0
        %s251 = sadd.s32 %s250, %s248
        %s252 = smul.addr %s251, 4
        %s253 = scalar_lea.vmem %s1, %s252
        %p254 = pneg %p95
        %p255 = pneg %p92
        %p256 = pneg %p116
        %p257 = pneg %p113
        %p258 = pneg %p137
        %p259 = pneg %p134
        %p260 = pneg %p165
        %p261 = pneg %p162
        %s262 = sand.u32 %s152, 1
        %s263 = scalar_lea.sflag [#allocation3], %s262
        %s264 = sand.u32 %s152, 1
        %s265 = smul.addr %s264, 8
        %s266 = scalar_lea.vmem [#allocation2], %s265
        %p267 = scmp.lt.s32.totalorder %s23, 0
        %s268 = scalar_select %p267, %s23, 0
        %p269 = scmp.lt.s32.totalorder %s22, 1
        %s270 = scalar_select %p269, %s22, 1
        %p271 = scmp.lt.s32.totalorder %s268, 0
        %s272 = scalar_select %p271, %s268, 0
        %s273 = sadd.s32 %s272, %s270
        %s274 = smul.addr %s273, 4
        %s275 = scalar_lea.vmem %s0, %s274
        %p276 = scmp.lt.s32.totalorder %s23, 0
        %s277 = scalar_select %p276, %s23, 0
        %s278 = ssub.s32 %s23, 1
        %p279 = scmp.lt.s32.totalorder %s278, 0
        %s280 = scalar_select %p279, %s278, 0
        %p281 = scmp.gt.s32.totalorder %s280, 0
        %s282 = scalar_select %p281, %s280, 0
        %p283 = scmp.lt.s32.totalorder %s22, 1
        %s284 = scalar_select %p283, %s22, 1
        %p285 = scmp.lt.s32.totalorder %s282, 0
        %s286 = scalar_select %p285, %s282, 0
        %s287 = sadd.s32 %s286, %s284
        %s288 = smul.addr %s287, 4
        %s289 = scalar_lea.vmem %s1, %s288
        %s290 = ssub.s32 %s23, 1
        %p291 = scmp.lt.s32.totalorder %s290, 0
        %s292 = scalar_select %p291, %s290, 0
        %p293 = scmp.gt.s32.totalorder %s292, 0
        %s294 = scalar_select %p293, %s292, 0
        %v295 = vld [vmem:[%s275] sm:$0xf]
        %296 = vrot.lane.b32.xlu0 %v295, 1
        %v297 = vpop.permute.xlu0 %296
        %v298 = vlaneseq
        %v299 = vand.u32 %v298, 127
        %v300 = vld [vmem:[%s289] sm:$0xf]
        %p301 = scmp.gt.s32.totalorder %s23, 0
        %s302 = scalar_select %p301, 1, 0
        %v303 = vstv %s302
        %vm304 = vcmp.eq.s32.totalorder %v303, 1
        %v305 = vsel %vm304, %v300, 0.0
        %vm306 = vcmp.eq.s32.totalorder %v299, 0
        %308 = vset.pattern.permute.xlu0 15
        %309 = vperm.xlu0 %308, %v305
        %v310 = vpop.permute.xlu0 %309
        %v312 = vsel %vm306, %v310, %v297
        %v313 = vld [vmem:[%s2] sm:$0xff]
        %v314 = vld [vmem:[%s3] sm:$0xff]
        %316 = vset.pattern.permute.xlu0 0
        %317 = vperm.xlu0 %316, %v314
        %v318 = vpop.permute.xlu0 %317
        %vm320 = vcmask 31744
        %v322 = vsel %vm320, %v313, 0
        %vm324 = vcmask 1043456
        %v326 = vsel %vm324, %v312, 0
        %328 = vmatprep.subr.mxu0 0.0
        %329 = vmatpush1.msra.mxu0 %v326
        %330 = vmatprep.subr.mxu0 0.0
        %331 = vmatpush1.msra.mxu0 0.0
        %332 = vmatprep.subr.mxu0 0.0
        %333 = vmatpush1.msra.mxu0 0.0
        %334 = vmatprep.subr.mxu0 0.0
        %335 = vmatpush1.msra.mxu0 0.0
        %336 = vmatprep.subr.mxu0 0.0
        %337 = vmatpush1.msra.mxu0 0.0
        %338 = vmatprep.subr.mxu0 0.0
        %339 = vmatpush1.msra.mxu0 0.0
        %340 = vmatprep.subr.mxu0 0.0
        %341 = vmatpush1.msra.mxu0 0.0
        %342 = vmatprep.subr.mxu0 0.0
        %343 = vmatpush1.msra.mxu0 0.0
        %344 = vmatprep.subr.mxu0 0.0
        %345 = vmatpush1.msra.mxu0 0.0
        %346 = vmatprep.subr.mxu0 0.0
        %347 = vmatpush1.msra.mxu0 0.0
        %348 = vmatprep.subr.mxu0 0.0
        %349 = vmatpush1.msra.mxu0 0.0
        %350 = vmatprep.subr.mxu0 0.0
        %351 = vmatpush1.msra.mxu0 0.0
        %352 = vmatprep.subr.mxu0 0.0
        %353 = vmatpush1.msra.mxu0 0.0
        %354 = vmatprep.subr.mxu0 0.0
        %355 = vmatpush1.msra.mxu0 0.0
        %356 = vmatprep.subr.mxu0 0.0
        %357 = vmatpush1.msra.mxu0 0.0
        %358 = vmatprep.subr.mxu0 0.0
        %359 = vmatpush1.msra.mxu0 0.0
        %360 = vmatprep.subr.mxu0 0.0
        %361 = vmatpush1.msra.mxu0 0.0
        %362 = vmatprep.subr.mxu0 0.0
        %363 = vmatpush1.msra.mxu0 0.0
        %364 = vmatprep.subr.mxu0 0.0
        %365 = vmatpush1.msra.mxu0 0.0
        %366 = vmatprep.subr.mxu0 0.0
        %367 = vmatpush1.msra.mxu0 0.0
        %368 = vmatprep.subr.mxu0 0.0
        %369 = vmatpush1.msra.mxu0 0.0
        %370 = vmatprep.subr.mxu0 0.0
        %371 = vmatpush1.msra.mxu0 0.0
        %372 = vmatprep.subr.mxu0 0.0
        %373 = vmatpush1.msra.mxu0 0.0
        %374 = vmatprep.subr.mxu0 0.0
        %375 = vmatpush1.msra.mxu0 0.0
        %376 = vmatprep.subr.mxu0 0.0
        %377 = vmatpush1.msra.mxu0 0.0
        %378 = vmatprep.subr.mxu0 0.0
        %379 = vmatpush1.msra.mxu0 0.0
        %380 = vmatprep.subr.mxu0 0.0
        %381 = vmatpush1.msra.mxu0 0.0
        %382 = vmatprep.subr.mxu0 0.0
        %383 = vmatpush1.msra.mxu0 0.0
        %384 = vmatprep.subr.mxu0 0.0
        %385 = vmatpush1.msra.mxu0 0.0
        %386 = vmatprep.subr.mxu0 0.0
        %387 = vmatpush1.msra.mxu0 0.0
        %388 = vmatprep.subr.mxu0 0.0
        %389 = vmatpush1.msra.mxu0 0.0
        %390 = vmatprep.subr.mxu0 0.0
        %391 = vmatpush1.msra.mxu0 0.0
        %392 = vmatprep.mubr.f32.mxu0 0.0
        %393 = vmatmul.mubr.f32.gmra.mrb[0].mxu0 %v322
        %v394 = vpop.f32.mrb[0].mxu0
        %v395 = vadd.f32 %v318, %v394
        %v396 = vpop.f32.mrb[0].mxu0
        %397 = vdwg.mxu0
        %s398 = smul.u32 %s23, 128
        %v399 = vstv %s398
        %v400 = vadd.s32 %v399, %v299
        %vm401 = vcmp.ge.s32.totalorder %v400, 17
        %v402 = vsel %vm401, %v318, %v395
        %403 = vst [vmem:[%s266] sm:$0xff] %v402
        %s404 = sand.u32 %s152, 1
        %s405 = scalar_lea.sflag [#allocation3], %s404
        %s406 = sand.u32 %s152, 1
        %s407 = smul.addr %s406, 8
        %s408 = scalar_lea.vmem [#allocation2], %s407
        // Predicated region
        $region37: #{my_conv1d_forward.1} parent=35 // pred_check
          %p409 = pneg %p162
        $region38: #{my_conv1d_forward.1} parent=35 // pred_check_branch
          %411 = sbr.rel (%p409) target = $region40
        $region39: #{my_conv1d_forward.1} parent=35 // pred_region
          %s413 = ssub.s32 128, 128
          %414 = vsyncadd %s405, %s413
          %s415 = sadd.s32 %s23, %s22
          %s416 = smul.addr %s415, 128
          %s417 = scalar_lea.hbm %s4, %s416
          %s419 = sshll.u32 %s408, 4
          %s420 = int_to_ptr.vmem [resolvable:$true] %s419
          %422 = dma.vmem_to_hbm [thread:$0]  %s420, 128, %s417, %s405
        $region40: #{my_conv1d_forward.1} parent=35 // pred_fallthru
          _
      $region36: #{my_conv1d_forward.1} parent=5 // pred_fallthru
        _
      %p423 = scmp.le.s32.totalorder 2, %s13
      // Predicated region
      $region41: #{my_conv1d_forward.1} parent=5 // pred_check
        %p424 = pneg %p423
      $region42: #{my_conv1d_forward.1} parent=5 // pred_check_branch
        %426 = sbr.rel (%p424) target = $region44
      $region43: #{my_conv1d_forward.1} parent=5 // pred_region
        %s427 = ssub.s32 %s13, 2
        // Predicated region
        $region45: #{my_conv1d_forward.1} parent=43 // pred_check
          %p428 = pneg %p168
        $region46: #{my_conv1d_forward.1} parent=43 // pred_check_branch
          %430 = sbr.rel (%p428) target = $region48
        $region47: #{my_conv1d_forward.1} parent=43 // pred_region
          %s431 = sand.u32 %s153, 1
          %s432 = scalar_lea.sflag [#allocation3], %s431
          %s433 = sand.u32 %s153, 1
          %s434 = smul.addr %s433, 8
          %s435 = scalar_lea.vmem [#allocation2], %s434
          %436 = dma.done %s432, 128
        $region48: #{my_conv1d_forward.1} parent=43 // pred_fallthru
          _
      $region44: #{my_conv1d_forward.1} parent=5 // pred_fallthru
        _
    $region6: #{my_conv1d_forward.1} parent=1 // loop_footer
      %s17 = sadd.s32 1, %s13
    $region7: #{my_conv1d_forward.1} parent=1 // loop_footer_branch
      %12 = sbr.rel target = $region3
    $region8: #{my_conv1d_forward.1} parent=1 // loop_exit
      _
    %437 = vsyncpa [#allocation3], 1
    %s438 = scalar_lea.sflag [#allocation3], 1
    %439 = vsyncpa %s438, 1

</llo_original>
